<compile_context>
chip_gen: v7x
topology: tpu7x:2x2x1
jax: 0.10.0
libtpu: 0.0.40
codegen_flags: <defaults>
</compile_context>

<pallas_src>
import functools

import numpy as np
import jax
import jax.numpy as jnp
from jax.experimental import pallas as pl
from jax.experimental.pallas import tpu as pltpu

A1 = 0.1
N_SCALE = 1.0 / A1
SCALE = N_SCALE * A1  # == 1.0 exactly; multiply is elided below when == 1.0

LANE = 128      # vreg lane width: hidden/output feature dims zero-padded to this
ROW_GRAN = 16   # sublane granularity (bf16 packing) for batch-row tiles


def _round_up(x, m):
    return ((x + m - 1) // m) * m


def _default_bf16_tanh():
    """bf16 EUP tanh on v6e/v7x; f32 tanh on v5e and older (no bf16 EUP path)."""
    try:
        kind = jax.devices()[0].device_kind.lower()
    except Exception:
        return False
    return not any(t in kind for t in ("v2", "v3", "v4", "v5"))


def _vmem_cap_bytes():
    """Per-generation usable VMEM cap (physical minus headroom)."""
    try:
        cap = int(pltpu.get_tpu_info().vmem_capacity_bytes)
    except Exception:
        cap = 64 << 20  # safe fallback (v7x physical)
    return max(cap - (12 << 20), 16 << 20)


def _vmem_limit_bytes(tm, d_in, hp, dp_out, op_dtype, out_dtype):
    osz = jnp.dtype(op_dtype).itemsize
    outsz = jnp.dtype(out_dtype).itemsize
    weights = 4 * d_in * hp + osz * (3 * hp * hp + hp * dp_out)   # w1 f32, rest op_dtype
    biases = 4 * (4 * hp + dp_out)                                # f32 bias rows
    io = 2 * (4 * tm * d_in + outsz * tm * dp_out)                # double-buffered x / out tiles
    mid = 4 * tm * hp * 3                                         # f32 z + activation headroom
    need = 2 * (2 * (weights + biases) + io + mid)                # 2x safety margin
    return int(min(max(4 << 20, need), _vmem_cap_bytes()))


def _mlp_kernel(x_ref,
                w1_ref, b1_ref,
                w2_ref, b2_ref,
                w3_ref, b3_ref,
                w4_ref, b4_ref,
                w5_ref, b5_ref,
                o_ref, *, bf16_tanh):
    """Whole 5-layer forward for one (tm, ...) row tile.

    Layer 1 runs as D_in broadcast-FMAs on the VPU (exact f32; x stays un-padded
    in HBM).  Layers 2-5 are lane-aligned MXU dots in the storage dtype (bf16 by
    default) with f32 accumulation + bias.  Activations are returned already in
    the matmul dtype so only bf16 copies stay live across layers.
    """
    op_dtype = w2_ref.dtype

    def scaled(z):
        return z if SCALE == 1.0 else SCALE * z   # dead for a1=0.1 (n*a1 == 1)

    def activate(z):
        if bf16_tanh:
            # bf16 EUP tanh (v6e/v7x): result is already in op_dtype.
            return jnp.tanh(z.astype(op_dtype))
        return jnp.tanh(z).astype(op_dtype)

    # ---- Layer 1: tiny D_in -> unrolled VPU FMAs instead of a padded MXU dot.
    # (For large D_in, switch this to a lane-padded x tile + jnp.dot.)
    x = x_ref[...]                                   # (tm, D_in) f32
    d_in = x_ref.shape[1]
    z = b1_ref[...] + x[:, 0:1] * w1_ref[0:1, :]     # (tm, Hp) f32
    for k in range(1, d_in):
        z = z + x[:, k:k + 1] * w1_ref[k:k + 1, :]
    h = activate(scaled(z))

    # ---- Layers 2-5: lane-aligned MXU dots.
    def layer(h, w_ref, b_ref, act):
        z = jnp.dot(h, w_ref[...], preferred_element_type=jnp.float32) + b_ref[...]
        z = scaled(z)
        return activate(z) if act else z

    h = layer(h, w2_ref, b2_ref, True)
    h = layer(h, w3_ref, b3_ref, True)
    h = layer(h, w4_ref, b4_ref, True)
    y = layer(h, w5_ref, b5_ref, False)
    o_ref[...] = y.astype(o_ref.dtype)


def prepare_params(params, *, use_bf16=True):
    """One-time lane-pad + cast of weights/biases (hoisted out of the per-call path).

    w1/b1 stay f32 (layer 1 is computed on the VPU in f32); w2..w5 are stored in
    the matmul dtype (bf16 by default); biases are f32 (1, H) rows.
    """
    op_dtype = jnp.bfloat16 if use_bf16 else jnp.float32
    D_in, H = params["w1"].shape
    D_out = params["w5"].shape[1]
    Hp = _round_up(H, LANE)
    Dp_out = _round_up(D_out, LANE)

    def pad2(a, r, c, dtype):
        return jnp.pad(a, ((0, r - a.shape[0]), (0, c - a.shape[1]))).astype(dtype)

    return {
        "dims": (D_in, H, D_out),
        "op_dtype": op_dtype,
        "w1": pad2(params["w1"], D_in, Hp, jnp.float32),
        "b1": pad2(params["b1"], 1, Hp, jnp.float32),
        "w2": pad2(params["w2"], Hp, Hp, op_dtype),
        "b2": pad2(params["b2"], 1, Hp, jnp.float32),
        "w3": pad2(params["w3"], Hp, Hp, op_dtype),
        "b3": pad2(params["b3"], 1, Hp, jnp.float32),
        "w4": pad2(params["w4"], Hp, Hp, op_dtype),
        "b4": pad2(params["b4"], 1, Hp, jnp.float32),
        "w5": pad2(params["w5"], Hp, Dp_out, op_dtype),
        "b5": pad2(params["b5"], 1, Dp_out, jnp.float32),
    }


def particular_forward(x, prep, *, tm=512, bf16_tanh=None, out_store_dtype=jnp.bfloat16):
    """x: (N, D_in) float32.  prep: output of prepare_params()."""
    N, D_in = x.shape
    D_in_p, H, D_out = prep["dims"]
    assert D_in == D_in_p, "x feature dim does not match prepared params"
    op_dtype = prep["op_dtype"]
    Hp = prep["w2"].shape[0]
    Dp_out = prep["w5"].shape[1]

    if bf16_tanh is None:
        bf16_tanh = _default_bf16_tanh()
    bf16_tanh = bool(bf16_tanh) and op_dtype == jnp.bfloat16

    # Row tiling: tiles of ~512 rows reach the 85%+ HBM-roofline regime; for big
    # batches keep >= 2 balanced grid steps so both v7x TensorCores get work.
    Nr = _round_up(N, ROW_GRAN)
    tm_cap = max(ROW_GRAN, _round_up(tm, ROW_GRAN))
    steps = max(1, -(-Nr // tm_cap))
    if steps == 1 and Nr >= 2 * 256:
        steps = 2  # v7x megacore: don't swallow a big batch in a single step
    tm_eff = _round_up(-(-Nr // steps), ROW_GRAN)
    Np = tm_eff * steps

    xp = x if Np == N else jnp.pad(x, ((0, Np - N), (0, 0)))  # rows only, stays f32

    def resident(shape):
        # Constant index_map: fetched once, stays resident across grid steps.
        # TODO(synk): for large H (resident weights approaching VMEM), pipeline
        # the weights layer-by-layer over an extra "arbitrary" grid axis instead
        # of keeping all five matrices resident.
        return pl.BlockSpec(shape, lambda i: (0, 0))

    in_specs = [
        pl.BlockSpec((tm_eff, D_in), lambda i: (i, 0)),  # x: un-padded lanes, f32
        resident((D_in, Hp)), resident((1, Hp)),         # w1, b1 (f32)
        resident((Hp, Hp)),   resident((1, Hp)),         # w2, b2
        resident((Hp, Hp)),   resident((1, Hp)),         # w3, b3
        resident((Hp, Hp)),   resident((1, Hp)),         # w4, b4
        resident((Hp, Dp_out)), resident((1, Dp_out)),   # w5, b5
    ]
    out_spec = pl.BlockSpec((tm_eff, Dp_out), lambda i: (i, 0))

    vmem_limit = _vmem_limit_bytes(tm_eff, D_in, Hp, Dp_out, op_dtype, out_store_dtype)

    kernel = functools.partial(_mlp_kernel, bf16_tanh=bf16_tanh)

    y_pad = pl.pallas_call(
        kernel,
        out_shape=jax.ShapeDtypeStruct((Np, Dp_out), out_store_dtype),
        grid_spec=pltpu.PrefetchScalarGridSpec(
            num_scalar_prefetch=0,
            grid=(steps,),
            in_specs=in_specs,
            out_specs=out_spec,
        ),
        compiler_params=pltpu.CompilerParams(
            dimension_semantics=("parallel",),
            vmem_limit_bytes=vmem_limit),
    )(xp, prep["w1"], prep["b1"], prep["w2"], prep["b2"], prep["w3"], prep["b3"],
      prep["w4"], prep["b4"], prep["w5"], prep["b5"])

    # NOTE: for tiny batches (single grid step, e.g. the N=16 test) the call is
    # pure launch + single-DMA latency; the slice/cast below fuses into the
    # surrounding jit.  Padded rows of y_pad carry garbage by design and are
    # sliced off here — never reduce over y_pad before this slice.
    return y_pad[:N, :D_out].astype(jnp.float32)


def init_params(key, D_in, H, D_out):
    """Deterministic init mirroring the PyTorch module's normal_ initializers.

    PyTorch Linear weight is (out, in); we store the transpose (in, out) so the
    kernel can do x @ W directly.
    """
    ks = jax.random.split(key, 10)

    def w(k, fan_in, fan_out, std):
        return jax.random.normal(k, (fan_out, fan_in), jnp.float32).T * std

    def b(k, fan_out):
        return jax.random.normal(k, (1, fan_out), jnp.float32) * 1.0

    return {
        "w1": w(ks[0], D_in, H, np.sqrt(2.0 / (D_in + H))), "b1": b(ks[1], H),
        "w2": w(ks[2], H, H, np.sqrt(2.0 / (H + H))),       "b2": b(ks[3], H),
        "w3": w(ks[4], H, H, np.sqrt(2.0 / (H + H))),       "b3": b(ks[5], H),
        "w4": w(ks[6], H, H, np.sqrt(2.0 / (H + H))),       "b4": b(ks[7], H),
        "w5": w(ks[8], H, D_out, np.sqrt(2.0 / (H + D_out))), "b5": b(ks[9], D_out),
    }


def particular_reference(x, p, *, use_bf16=True, bf16_tanh=False, out_round=None):
    """Pure-JAX reference mirroring the kernel's dtype path.

    Layer 1 is f32 (matches the VPU FMA path); layers 2-5 use op-dtype matmuls
    with f32 accumulation; tanh optionally on bf16-rounded inputs; output
    optionally rounded to the kernel's store dtype.
    """
    op = jnp.bfloat16 if use_bf16 else jnp.float32

    def lin(h, w, b, dt):
        return jnp.dot(h.astype(dt), w.astype(dt),
                       preferred_element_type=jnp.float32) + b

    def act(z):
        if bf16_tanh:
            return jnp.tanh(z.astype(jnp.bfloat16)).astype(jnp.float32)
        return jnp.tanh(z)

    h = act(SCALE * lin(x, p["w1"], p["b1"], jnp.float32))
    h = act(SCALE * lin(h, p["w2"], p["b2"], op))
    h = act(SCALE * lin(h, p["w3"], p["b3"], op))
    h = act(SCALE * lin(h, p["w4"], p["b4"], op))
    y = SCALE * lin(h, p["w5"], p["b5"], op)
    if out_round is not None:
        y = y.astype(out_round).astype(jnp.float32)
    return y


if __name__ == "__main__":
    D_in, H, D_out = 4, 32, 2
    N = 16  # batch

    key = jax.random.PRNGKey(0)
    k_x, k_p = jax.random.split(key)
    x = jax.random.normal(k_x, (N, D_in), jnp.float32)
    params = init_params(k_p, D_in, H, D_out)

    # One-time padding/casting of parameters (hoisted out of the forward path).
    prep = prepare_params(params, use_bf16=True)
    bf16_tanh = _default_bf16_tanh()

    y = particular_forward(x, prep, bf16_tanh=bf16_tanh)
    y = jax.block_until_ready(y)
    assert y.shape == (N, D_out) and y.dtype == jnp.float32

    # Matched-path reference (f32 layer 1, bf16 matmuls for layers 2-5, same tanh
    # dtype, bf16 output rounding).
    y_ref = particular_reference(x, params, use_bf16=True, bf16_tanh=bf16_tanh,
                                 out_round=jnp.bfloat16)
    np.testing.assert_allclose(np.asarray(y), np.asarray(y_ref), rtol=2e-2, atol=2e-2)

    # Loose sanity check against pure-f32 math (difference is bf16 matmul/tanh/
    # output rounding only).
    y_f32 = particular_reference(x, params, use_bf16=False, bf16_tanh=False)
    np.testing.assert_allclose(np.asarray(y), np.asarray(y_f32), rtol=1e-1, atol=1e-1)

    print("KERNEL_OK")
</pallas_src>

<mosaic_0001>
module attributes {stable_mosaic.version = 11 : i64} {
  func.func @_mlp_kernel(%arg0: i32, %arg1: memref<16x4xf32, #tpu.memory_space<vmem>>, %arg2: memref<4x128xf32, #tpu.memory_space<vmem>>, %arg3: memref<1x128xf32, #tpu.memory_space<vmem>>, %arg4: memref<128x128xbf16, #tpu.memory_space<vmem>>, %arg5: memref<1x128xf32, #tpu.memory_space<vmem>>, %arg6: memref<128x128xbf16, #tpu.memory_space<vmem>>, %arg7: memref<1x128xf32, #tpu.memory_space<vmem>>, %arg8: memref<128x128xbf16, #tpu.memory_space<vmem>>, %arg9: memref<1x128xf32, #tpu.memory_space<vmem>>, %arg10: memref<128x128xbf16, #tpu.memory_space<vmem>>, %arg11: memref<1x128xf32, #tpu.memory_space<vmem>>, %arg12: memref<16x128xbf16, #tpu.memory_space<vmem>>) attributes {dimension_semantics = [#tpu.dimension_semantics<parallel>], iteration_bounds = array<i64: 1>, scalar_prefetch = 0 : i64, scratch_operands = 0 : i64, tpu.core_type = #tpu.core_type<tc>, window_params = [{transform_indices = @transform_0, window_bounds = array<i64: 16, 4>}, {pipeline_mode = #tpu.pipeline_mode<synchronous>, transform_indices = @transform_1, window_bounds = array<i64: 4, 128>}, {pipeline_mode = #tpu.pipeline_mode<synchronous>, transform_indices = @transform_2, window_bounds = array<i64: 1, 128>}, {pipeline_mode = #tpu.pipeline_mode<synchronous>, transform_indices = @transform_3, window_bounds = array<i64: 128, 128>}, {pipeline_mode = #tpu.pipeline_mode<synchronous>, transform_indices = @transform_4, window_bounds = array<i64: 1, 128>}, {pipeline_mode = #tpu.pipeline_mode<synchronous>, transform_indices = @transform_5, window_bounds = array<i64: 128, 128>}, {pipeline_mode = #tpu.pipeline_mode<synchronous>, transform_indices = @transform_6, window_bounds = array<i64: 1, 128>}, {pipeline_mode = #tpu.pipeline_mode<synchronous>, transform_indices = @transform_7, window_bounds = array<i64: 128, 128>}, {pipeline_mode = #tpu.pipeline_mode<synchronous>, transform_indices = @transform_8, window_bounds = array<i64: 1, 128>}, {pipeline_mode = #tpu.pipeline_mode<synchronous>, transform_indices = @transform_9, window_bounds = array<i64: 128, 128>}, {pipeline_mode = #tpu.pipeline_mode<synchronous>, transform_indices = @transform_10, window_bounds = array<i64: 1, 128>}, {transform_indices = @transform_11, window_bounds = array<i64: 16, 128>}]} {
    %c0 = arith.constant 0 : index
    %c0_0 = arith.constant 0 : index
    %0 = vector.load %arg1[%c0, %c0_0] : memref<16x4xf32, #tpu.memory_space<vmem>>, vector<16x4xf32>
    %c0_1 = arith.constant 0 : index
    %c0_2 = arith.constant 0 : index
    %1 = vector.load %arg3[%c0_1, %c0_2] : memref<1x128xf32, #tpu.memory_space<vmem>>, vector<1x128xf32>
    %2 = vector.extract_strided_slice %0 {offsets = [0, 0], sizes = [16, 1], strides = [1, 1]} : vector<16x4xf32> to vector<16x1xf32>
    %c0_3 = arith.constant 0 : index
    %c0_4 = arith.constant 0 : index
    %3 = vector.load %arg2[%c0_3, %c0_4] : memref<4x128xf32, #tpu.memory_space<vmem>>, vector<1x128xf32>
    %4 = vector.broadcast %2 : vector<16x1xf32> to vector<16x128xf32>
    %5 = vector.broadcast %3 : vector<1x128xf32> to vector<16x128xf32>
    %6 = arith.mulf %4, %5 : vector<16x128xf32>
    %7 = vector.broadcast %1 : vector<1x128xf32> to vector<16x128xf32>
    %8 = arith.addf %7, %6 : vector<16x128xf32>
    %9 = vector.extract_strided_slice %0 {offsets = [0, 1], sizes = [16, 1], strides = [1, 1]} : vector<16x4xf32> to vector<16x1xf32>
    %c1 = arith.constant 1 : index
    %c0_5 = arith.constant 0 : index
    %10 = vector.load %arg2[%c1, %c0_5] : memref<4x128xf32, #tpu.memory_space<vmem>>, vector<1x128xf32>
    %11 = vector.broadcast %9 : vector<16x1xf32> to vector<16x128xf32>
    %12 = vector.broadcast %10 : vector<1x128xf32> to vector<16x128xf32>
    %13 = arith.mulf %11, %12 : vector<16x128xf32>
    %14 = arith.addf %8, %13 : vector<16x128xf32>
    %15 = vector.extract_strided_slice %0 {offsets = [0, 2], sizes = [16, 1], strides = [1, 1]} : vector<16x4xf32> to vector<16x1xf32>
    %c2 = arith.constant 2 : index
    %c0_6 = arith.constant 0 : index
    %16 = vector.load %arg2[%c2, %c0_6] : memref<4x128xf32, #tpu.memory_space<vmem>>, vector<1x128xf32>
    %17 = vector.broadcast %15 : vector<16x1xf32> to vector<16x128xf32>
    %18 = vector.broadcast %16 : vector<1x128xf32> to vector<16x128xf32>
    %19 = arith.mulf %17, %18 : vector<16x128xf32>
    %20 = arith.addf %14, %19 : vector<16x128xf32>
    %21 = vector.extract_strided_slice %0 {offsets = [0, 3], sizes = [16, 1], strides = [1, 1]} : vector<16x4xf32> to vector<16x1xf32>
    %c3 = arith.constant 3 : index
    %c0_7 = arith.constant 0 : index
    %22 = vector.load %arg2[%c3, %c0_7] : memref<4x128xf32, #tpu.memory_space<vmem>>, vector<1x128xf32>
    %23 = vector.broadcast %21 : vector<16x1xf32> to vector<16x128xf32>
    %24 = vector.broadcast %22 : vector<1x128xf32> to vector<16x128xf32>
    %25 = arith.mulf %23, %24 : vector<16x128xf32>
    %26 = arith.addf %20, %25 : vector<16x128xf32>
    %27 = arith.truncf %26 : vector<16x128xf32> to vector<16x128xbf16>
    %28 = math.tanh %27 : vector<16x128xbf16>
    %c0_8 = arith.constant 0 : index
    %c0_9 = arith.constant 0 : index
    %29 = vector.load %arg4[%c0_8, %c0_9] : memref<128x128xbf16, #tpu.memory_space<vmem>>, vector<128x128xbf16>
    %cst = arith.constant dense<0.000000e+00> : vector<16x128xf32>
    %30 = tpu.matmul %28, %29, %cst {dimension_numbers = #tpu.dot_dimension_numbers<[1], [0], [0], [1], [0, 0, 1, 1], [], []>} : vector<16x128xbf16>, vector<128x128xbf16>, vector<16x128xf32> -> vector<16x128xf32>
    %c0_10 = arith.constant 0 : index
    %c0_11 = arith.constant 0 : index
    %31 = vector.load %arg5[%c0_10, %c0_11] : memref<1x128xf32, #tpu.memory_space<vmem>>, vector<1x128xf32>
    %32 = vector.broadcast %31 : vector<1x128xf32> to vector<16x128xf32>
    %33 = arith.addf %30, %32 : vector<16x128xf32>
    %34 = arith.truncf %33 : vector<16x128xf32> to vector<16x128xbf16>
    %35 = math.tanh %34 : vector<16x128xbf16>
    %c0_12 = arith.constant 0 : index
    %c0_13 = arith.constant 0 : index
    %36 = vector.load %arg6[%c0_12, %c0_13] : memref<128x128xbf16, #tpu.memory_space<vmem>>, vector<128x128xbf16>
    %cst_14 = arith.constant dense<0.000000e+00> : vector<16x128xf32>
    %37 = tpu.matmul %35, %36, %cst_14 {dimension_numbers = #tpu.dot_dimension_numbers<[1], [0], [0], [1], [0, 0, 1, 1], [], []>} : vector<16x128xbf16>, vector<128x128xbf16>, vector<16x128xf32> -> vector<16x128xf32>
    %c0_15 = arith.constant 0 : index
    %c0_16 = arith.constant 0 : index
    %38 = vector.load %arg7[%c0_15, %c0_16] : memref<1x128xf32, #tpu.memory_space<vmem>>, vector<1x128xf32>
    %39 = vector.broadcast %38 : vector<1x128xf32> to vector<16x128xf32>
    %40 = arith.addf %37, %39 : vector<16x128xf32>
    %41 = arith.truncf %40 : vector<16x128xf32> to vector<16x128xbf16>
    %42 = math.tanh %41 : vector<16x128xbf16>
    %c0_17 = arith.constant 0 : index
    %c0_18 = arith.constant 0 : index
    %43 = vector.load %arg8[%c0_17, %c0_18] : memref<128x128xbf16, #tpu.memory_space<vmem>>, vector<128x128xbf16>
    %cst_19 = arith.constant dense<0.000000e+00> : vector<16x128xf32>
    %44 = tpu.matmul %42, %43, %cst_19 {dimension_numbers = #tpu.dot_dimension_numbers<[1], [0], [0], [1], [0, 0, 1, 1], [], []>} : vector<16x128xbf16>, vector<128x128xbf16>, vector<16x128xf32> -> vector<16x128xf32>
    %c0_20 = arith.constant 0 : index
    %c0_21 = arith.constant 0 : index
    %45 = vector.load %arg9[%c0_20, %c0_21] : memref<1x128xf32, #tpu.memory_space<vmem>>, vector<1x128xf32>
    %46 = vector.broadcast %45 : vector<1x128xf32> to vector<16x128xf32>
    %47 = arith.addf %44, %46 : vector<16x128xf32>
    %48 = arith.truncf %47 : vector<16x128xf32> to vector<16x128xbf16>
    %49 = math.tanh %48 : vector<16x128xbf16>
    %c0_22 = arith.constant 0 : index
    %c0_23 = arith.constant 0 : index
    %50 = vector.load %arg10[%c0_22, %c0_23] : memref<128x128xbf16, #tpu.memory_space<vmem>>, vector<128x128xbf16>
    %cst_24 = arith.constant dense<0.000000e+00> : vector<16x128xf32>
    %51 = tpu.matmul %49, %50, %cst_24 {dimension_numbers = #tpu.dot_dimension_numbers<[1], [0], [0], [1], [0, 0, 1, 1], [], []>} : vector<16x128xbf16>, vector<128x128xbf16>, vector<16x128xf32> -> vector<16x128xf32>
    %c0_25 = arith.constant 0 : index
    %c0_26 = arith.constant 0 : index
    %52 = vector.load %arg11[%c0_25, %c0_26] : memref<1x128xf32, #tpu.memory_space<vmem>>, vector<1x128xf32>
    %53 = vector.broadcast %52 : vector<1x128xf32> to vector<16x128xf32>
    %54 = arith.addf %51, %53 : vector<16x128xf32>
    %55 = arith.truncf %54 : vector<16x128xf32> to vector<16x128xbf16>
    %c0_27 = arith.constant 0 : index
    %c0_28 = arith.constant 0 : index
    %56 = vector.load %arg12[%c0_27, %c0_28] : memref<16x128xbf16, #tpu.memory_space<vmem>>, vector<16x128xbf16>
    tpu.vector_store %arg12[%c0_27, %c0_28], %55 {strides = array<i32>} : memref<16x128xbf16, #tpu.memory_space<vmem>>, vector<16x128xbf16>,
    return
  }
  func.func @transform_0(%arg0: i32) -> (i32, i32) {
    %c0_i32 = arith.constant 0 : i32
    %c0_i32_0 = arith.constant 0 : i32
    return %arg0, %c0_i32 : i32, i32
  }
  func.func @transform_1(%arg0: i32) -> (i32, i32) {
    %c0_i32 = arith.constant 0 : i32
    %c0_i32_0 = arith.constant 0 : i32
    %c0_i32_1 = arith.constant 0 : i32
    return %c0_i32, %c0_i32_0 : i32, i32
  }
  func.func @transform_2(%arg0: i32) -> (i32, i32) {
    %c0_i32 = arith.constant 0 : i32
    %c0_i32_0 = arith.constant 0 : i32
    %c0_i32_1 = arith.constant 0 : i32
    return %c0_i32, %c0_i32_0 : i32, i32
  }
  func.func @transform_3(%arg0: i32) -> (i32, i32) {
    %c0_i32 = arith.constant 0 : i32
    %c0_i32_0 = arith.constant 0 : i32
    %c0_i32_1 = arith.constant 0 : i32
    return %c0_i32, %c0_i32_0 : i32, i32
  }
  func.func @transform_4(%arg0: i32) -> (i32, i32) {
    %c0_i32 = arith.constant 0 : i32
    %c0_i32_0 = arith.constant 0 : i32
    %c0_i32_1 = arith.constant 0 : i32
    return %c0_i32, %c0_i32_0 : i32, i32
  }
  func.func @transform_5(%arg0: i32) -> (i32, i32) {
    %c0_i32 = arith.constant 0 : i32
    %c0_i32_0 = arith.constant 0 : i32
    %c0_i32_1 = arith.constant 0 : i32
    return %c0_i32, %c0_i32_0 : i32, i32
  }
  func.func @transform_6(%arg0: i32) -> (i32, i32) {
    %c0_i32 = arith.constant 0 : i32
    %c0_i32_0 = arith.constant 0 : i32
    %c0_i32_1 = arith.constant 0 : i32
    return %c0_i32, %c0_i32_0 : i32, i32
  }
  func.func @transform_7(%arg0: i32) -> (i32, i32) {
    %c0_i32 = arith.constant 0 : i32
    %c0_i32_0 = arith.constant 0 : i32
    %c0_i32_1 = arith.constant 0 : i32
    return %c0_i32, %c0_i32_0 : i32, i32
  }
  func.func @transform_8(%arg0: i32) -> (i32, i32) {
    %c0_i32 = arith.constant 0 : i32
    %c0_i32_0 = arith.constant 0 : i32
    %c0_i32_1 = arith.constant 0 : i32
    return %c0_i32, %c0_i32_0 : i32, i32
  }
  func.func @transform_9(%arg0: i32) -> (i32, i32) {
    %c0_i32 = arith.constant 0 : i32
    %c0_i32_0 = arith.constant 0 : i32
    %c0_i32_1 = arith.constant 0 : i32
    return %c0_i32, %c0_i32_0 : i32, i32
  }
  func.func @transform_10(%arg0: i32) -> (i32, i32) {
    %c0_i32 = arith.constant 0 : i32
    %c0_i32_0 = arith.constant 0 : i32
    %c0_i32_1 = arith.constant 0 : i32
    return %c0_i32, %c0_i32_0 : i32, i32
  }
  func.func @transform_11(%arg0: i32) -> (i32, i32) {
    %c0_i32 = arith.constant 0 : i32
    %c0_i32_0 = arith.constant 0 : i32
    return %arg0, %c0_i32 : i32, i32
  }
}

</mosaic_0001>

<llo_original>
// kernel: tpu_custom_call.1
$region0: #{tpu_custom_call.1}
  #allocation0 [shape = 'u32[]', space=smem, size = 0x4, offset = 0x4, fixed_abs, tag = 'smem constant byte address 0x4 - core index']
  #allocation1 [shape = 'u32[144,128]{1,0:T(1,128)}', space=vmem, size = 0x12000, scoped, tag = 'internal scratch']
  %s0 = inlined_call_operand.vmem [shape: f32[16,4], index: 0, kind: input, shape index: {}]
  %s1 = inlined_call_operand.vmem [shape: f32[4,128], index: 1, kind: input, shape index: {}]
  %s2 = inlined_call_operand.vmem [shape: f32[1,128], index: 2, kind: input, shape index: {}]
  %s3 = inlined_call_operand.hbm [shape: bf16[128,128], index: 3, kind: input, shape index: {}]
  %s4 = inlined_call_operand.vmem [shape: f32[1,128], index: 4, kind: input, shape index: {}]
  %s5 = inlined_call_operand.hbm [shape: bf16[128,128], index: 5, kind: input, shape index: {}]
  %s6 = inlined_call_operand.vmem [shape: f32[1,128], index: 6, kind: input, shape index: {}]
  %s7 = inlined_call_operand.hbm [shape: bf16[128,128], index: 7, kind: input, shape index: {}]
  %s8 = inlined_call_operand.vmem [shape: f32[1,128], index: 8, kind: input, shape index: {}]
  %s9 = inlined_call_operand.hbm [shape: bf16[128,128], index: 9, kind: input, shape index: {}]
  %s10 = inlined_call_operand.vmem [shape: f32[1,128], index: 10, kind: input, shape index: {}]
  %s11 = inlined_call_operand.hbm [shape: bf16[16,128], index: 11, kind: output, shape index: {}]
  %s12 = sld [smem:[#allocation0]]
  $region70: #{tpu_custom_call.1} parent=0
    _
  %s14 = ssub.s32 1, %s12
  %s15 = scalar_select 0, %s14, %s12
  $region1: #{tpu_custom_call.1} parent=0
    #allocation2 [shape = 'u8[32768]{0}', space=vmem, size = 0x8000, scoped, tag = 'input window, operand 3, single buffered']
    #allocation3 [shape = 's32[1]{0}', space=sflag, size = 0x4, scoped, tag = 'scoped memory for tpu_custom_call.1']
    #allocation4 [shape = 's32[1]{0}', space=sflag, size = 0x4, scoped, tag = 'scoped memory for tpu_custom_call.1']
    #allocation5 [shape = 'u8[32768]{0}', space=vmem, size = 0x8000, scoped, tag = 'input window, operand 5, single buffered']
    #allocation6 [shape = 's32[1]{0}', space=sflag, size = 0x4, scoped, tag = 'scoped memory for tpu_custom_call.1']
    #allocation7 [shape = 'u8[32768]{0}', space=vmem, size = 0x8000, scoped, tag = 'input window, operand 7, single buffered']
    #allocation8 [shape = 'u8[32768]{0}', space=vmem, size = 0x8000, scoped, tag = 'input window, operand 9, single buffered']
    #allocation9 [shape = 's32[1]{0}', space=sflag, size = 0x4, scoped, tag = 'scoped memory for tpu_custom_call.1']
    #allocation10 [shape = 'u8[4096]{0}', space=vmem, size = 0x1000, scoped, tag = 'output window, operand 0, single buffered']
    %16 = vsyncpa [#allocation3], 0
    %17 = vsyncpa [#allocation6], 0
    %18 = vsyncpa [#allocation9], 0
    %19 = vsyncpa [#allocation4], 0
    // Predicated region
    $region2: #{tpu_custom_call.1} parent=1 // pred_check
      _
    $region3: #{tpu_custom_call.1} parent=1 // pred_check_branch
      %21 = sbr.rel (0) target = $region5
    $region4: #{tpu_custom_call.1} parent=1 // pred_region
      _
    $region5: #{tpu_custom_call.1} parent=1 // pred_fallthru
      _
    // Predicated region
    $region6: #{tpu_custom_call.1} parent=1 // pred_check
      _
    $region7: #{tpu_custom_call.1} parent=1 // pred_check_branch
      %23 = sbr.rel (0) target = $region9
    $region8: #{tpu_custom_call.1} parent=1 // pred_region
      _
    $region9: #{tpu_custom_call.1} parent=1 // pred_fallthru
      _
    // Predicated region
    $region10: #{tpu_custom_call.1} parent=1 // pred_check
      _
    $region11: #{tpu_custom_call.1} parent=1 // pred_check_branch
      %25 = sbr.rel (0) target = $region13
    $region12: #{tpu_custom_call.1} parent=1 // pred_region
      _
    $region13: #{tpu_custom_call.1} parent=1 // pred_fallthru
      _
    // Predicated region
    $region14: #{tpu_custom_call.1} parent=1 // pred_check
      _
    $region15: #{tpu_custom_call.1} parent=1 // pred_check_branch
      %27 = sbr.rel (0) target = $region17
    $region16: #{tpu_custom_call.1} parent=1 // pred_region
      %s29 = ssub.s32 1024, 1024
      %30 = vsyncadd [#allocation3], %s29
      %s31 = sshll.u32 [#allocation2], 4
      %s32 = int_to_ptr.vmem [resolvable:$true] %s31
      %37 = dma.hbm_to_vmem [thread:$0]  %s3, 1024, %s32, [#allocation3], 64, 64, 4
    $region17: #{tpu_custom_call.1} parent=1 // pred_fallthru
      _
    // Predicated region
    $region18: #{tpu_custom_call.1} parent=1 // pred_check
      _
    $region19: #{tpu_custom_call.1} parent=1 // pred_check_branch
      %39 = sbr.rel (0) target = $region21
    $region20: #{tpu_custom_call.1} parent=1 // pred_region
      _
    $region21: #{tpu_custom_call.1} parent=1 // pred_fallthru
      _
    // Predicated region
    $region22: #{tpu_custom_call.1} parent=1 // pred_check
      _
    $region23: #{tpu_custom_call.1} parent=1 // pred_check_branch
      %41 = sbr.rel (0) target = $region25
    $region24: #{tpu_custom_call.1} parent=1 // pred_region
      %s43 = ssub.s32 1024, 1024
      %44 = vsyncadd [#allocation6], %s43
      %s45 = sshll.u32 [#allocation5], 4
      %s46 = int_to_ptr.vmem [resolvable:$true] %s45
      %51 = dma.hbm_to_vmem [thread:$0]  %s5, 1024, %s46, [#allocation6], 64, 64, 4
    $region25: #{tpu_custom_call.1} parent=1 // pred_fallthru
      _
    // Predicated region
    $region26: #{tpu_custom_call.1} parent=1 // pred_check
      _
    $region27: #{tpu_custom_call.1} parent=1 // pred_check_branch
      %53 = sbr.rel (0) target = $region29
    $region28: #{tpu_custom_call.1} parent=1 // pred_region
      _
    $region29: #{tpu_custom_call.1} parent=1 // pred_fallthru
      _
    // Predicated region
    $region30: #{tpu_custom_call.1} parent=1 // pred_check
      _
    $region31: #{tpu_custom_call.1} parent=1 // pred_check_branch
      %55 = sbr.rel (0) target = $region33
    $region32: #{tpu_custom_call.1} parent=1 // pred_region
      %s57 = ssub.s32 1024, 1024
      %58 = vsyncadd [#allocation6], %s57
      %s59 = sshll.u32 [#allocation7], 4
      %s60 = int_to_ptr.vmem [resolvable:$true] %s59
      %65 = dma.hbm_to_vmem [thread:$0]  %s7, 1024, %s60, [#allocation6], 64, 64, 4
    $region33: #{tpu_custom_call.1} parent=1 // pred_fallthru
      _
    // Predicated region
    $region34: #{tpu_custom_call.1} parent=1 // pred_check
      _
    $region35: #{tpu_custom_call.1} parent=1 // pred_check_branch
      %67 = sbr.rel (0) target = $region37
    $region36: #{tpu_custom_call.1} parent=1 // pred_region
      _
    $region37: #{tpu_custom_call.1} parent=1 // pred_fallthru
      _
    // Predicated region
    $region38: #{tpu_custom_call.1} parent=1 // pred_check
      _
    $region39: #{tpu_custom_call.1} parent=1 // pred_check_branch
      %69 = sbr.rel (0) target = $region41
    $region40: #{tpu_custom_call.1} parent=1 // pred_region
      %s71 = ssub.s32 1024, 1024
      %72 = vsyncadd [#allocation9], %s71
      %s73 = sshll.u32 [#allocation8], 4
      %s74 = int_to_ptr.vmem [resolvable:$true] %s73
      %79 = dma.hbm_to_vmem [thread:$0]  %s9, 1024, %s74, [#allocation9], 64, 64, 4
    $region41: #{tpu_custom_call.1} parent=1 // pred_fallthru
      _
    // Predicated region
    $region42: #{tpu_custom_call.1} parent=1 // pred_check
      _
    $region43: #{tpu_custom_call.1} parent=1 // pred_check_branch
      %81 = sbr.rel (0) target = $region45
    $region44: #{tpu_custom_call.1} parent=1 // pred_region
      _
    $region45: #{tpu_custom_call.1} parent=1 // pred_fallthru
      _
    // Predicated region
    $region46: #{tpu_custom_call.1} parent=1 // pred_check
      _
    $region47: #{tpu_custom_call.1} parent=1 // pred_check_branch
      %83 = sbr.rel (0) target = $region49
    $region48: #{tpu_custom_call.1} parent=1 // pred_region
      %84 = dma.done [#allocation3], 1024
    $region49: #{tpu_custom_call.1} parent=1 // pred_fallthru
      _
    // Predicated region
    $region50: #{tpu_custom_call.1} parent=1 // pred_check
      _
    $region51: #{tpu_custom_call.1} parent=1 // pred_check_branch
      %86 = sbr.rel (0) target = $region53
    $region52: #{tpu_custom_call.1} parent=1 // pred_region
      %87 = dma.done [#allocation6], 1024
    $region53: #{tpu_custom_call.1} parent=1 // pred_fallthru
      _
    // Predicated region
    $region54: #{tpu_custom_call.1} parent=1 // pred_check
      _
    $region55: #{tpu_custom_call.1} parent=1 // pred_check_branch
      %89 = sbr.rel (0) target = $region57
    $region56: #{tpu_custom_call.1} parent=1 // pred_region
      %90 = dma.done [#allocation6], 1024
    $region57: #{tpu_custom_call.1} parent=1 // pred_fallthru
      _
    // Predicated region
    $region58: #{tpu_custom_call.1} parent=1 // pred_check
      _
    $region59: #{tpu_custom_call.1} parent=1 // pred_check_branch
      %92 = sbr.rel (0) target = $region61
    $region60: #{tpu_custom_call.1} parent=1 // pred_region
      %93 = dma.done [#allocation9], 1024
    $region61: #{tpu_custom_call.1} parent=1 // pred_fallthru
      _
    %v95 = vld [vmem:[%s0] sm:$0xff]
    %v96 = vld [vmem:[%s0 + $0x8] sm:$0xff]
    %v97 = vld [vmem:[%s2] sm:$0x1]
    %v98 = vld [vmem:[%s1] sm:$0x1]
    %100 = vset.pattern.permute.xlu0 0
    %101 = vperm.xlu0 %100, %v95
    %v102 = vpop.permute.xlu0 %101
    %105 = vset.pattern.permute.xlu0 0
    %106 = vperm.xlu0 %105, %v96
    %v107 = vpop.permute.xlu0 %106
    %v109 = vlaneseq
    %v110 = vshrl.u32 %v109, 7
    %v111 = vsub.s32 0, %v110
    %v112 = vrot.slane %v98, %v111
    %v113 = vmul.f32 %v102, %v112
    %v114 = vmul.f32 %v107, %v112
    %v116 = vlaneseq
    %v117 = vshrl.u32 %v116, 7
    %v118 = vsub.s32 0, %v117
    %v119 = vrot.slane %v97, %v118
    %v121 = vadd.f32 %v119, %v113
    %v122 = vadd.f32 %v119, %v114
    %v123 = vld [vmem:[%s1 + $0x1] sm:$0x1]
    %124 = vset.pattern.permute.xlu0 1
    %125 = vperm.xlu0 %124, %v95
    %v126 = vpop.permute.xlu0 %125
    %128 = vset.pattern.permute.xlu0 1
    %129 = vperm.xlu0 %128, %v96
    %v130 = vpop.permute.xlu0 %129
    %v132 = vlaneseq
    %v133 = vshrl.u32 %v132, 7
    %v134 = vsub.s32 0, %v133
    %v135 = vrot.slane %v123, %v134
    %v136 = vmul.f32 %v126, %v135
    %v137 = vmul.f32 %v130, %v135
    %v138 = vadd.f32 %v121, %v136
    %v139 = vadd.f32 %v122, %v137
    %v140 = vld [vmem:[%s1 + $0x2] sm:$0x1]
    %141 = vset.pattern.permute.xlu0 2
    %142 = vperm.xlu0 %141, %v95
    %v143 = vpop.permute.xlu0 %142
    %145 = vset.pattern.permute.xlu0 2
    %146 = vperm.xlu0 %145, %v96
    %v147 = vpop.permute.xlu0 %146
    %v149 = vlaneseq
    %v150 = vshrl.u32 %v149, 7
    %v151 = vsub.s32 0, %v150
    %v152 = vrot.slane %v140, %v151
    %v153 = vmul.f32 %v143, %v152
    %v154 = vmul.f32 %v147, %v152
    %v155 = vadd.f32 %v138, %v153
    %v156 = vadd.f32 %v139, %v154
    %v157 = vld [vmem:[%s1 + $0x3] sm:$0x1]
    %158 = vset.pattern.permute.xlu0 3
    %159 = vperm.xlu0 %158, %v95
    %v160 = vpop.permute.xlu0 %159
    %162 = vset.pattern.permute.xlu0 3
    %163 = vperm.xlu0 %162, %v96
    %v164 = vpop.permute.xlu0 %163
    %v166 = vlaneseq
    %v167 = vshrl.u32 %v166, 7
    %v168 = vsub.s32 0, %v167
    %v169 = vrot.slane %v157, %v168
    %v170 = vmul.f32 %v160, %v169
    %v171 = vmul.f32 %v164, %v169
    %v172 = vadd.f32 %v155, %v170
    %v173 = vadd.f32 %v156, %v171
    %v174 = vpack.c.bf16 %v173, %v172
    %v175 = vtanh.bf16.pop %v174
    %v176 = vld [vmem:[#allocation2] sm:$0xf]
    %v177 = vld [vmem:[#allocation2 + $0x4] sm:$0xf]
    %v178 = vld [vmem:[#allocation2 + $0x8] sm:$0xf]
    %v179 = vld [vmem:[#allocation2 + $0xc] sm:$0xf]
    %v180 = vld [vmem:[#allocation2 + $0x10] sm:$0xf]
    %v181 = vld [vmem:[#allocation2 + $0x14] sm:$0xf]
    %v182 = vld [vmem:[#allocation2 + $0x18] sm:$0xf]
    %v183 = vld [vmem:[#allocation2 + $0x1c] sm:$0xf]
    %v184 = vld [vmem:[#allocation2 + $0x20] sm:$0xf]
    %v185 = vld [vmem:[#allocation2 + $0x24] sm:$0xf]
    %v186 = vld [vmem:[#allocation2 + $0x28] sm:$0xf]
    %v187 = vld [vmem:[#allocation2 + $0x2c] sm:$0xf]
    %v188 = vld [vmem:[#allocation2 + $0x30] sm:$0xf]
    %v189 = vld [vmem:[#allocation2 + $0x34] sm:$0xf]
    %v190 = vld [vmem:[#allocation2 + $0x38] sm:$0xf]
    %v191 = vld [vmem:[#allocation2 + $0x3c] sm:$0xf]
    %v192 = vld [vmem:[%s4] sm:$0x1]
    %v194 = vlaneseq
    %v195 = vshrl.u32 %v194, 7
    %v196 = vsub.s32 0, %v195
    %v197 = vrot.slane %v192, %v196
    %v215 = vunpack.c.l.b16 %v176
    %v216 = vunpack.c.l.b16 %v177
    %v217 = vunpack.c.l.b16 %v178
    %v218 = vunpack.c.l.b16 %v179
    %v219 = vunpack.c.l.b16 %v180
    %v220 = vunpack.c.l.b16 %v181
    %v221 = vunpack.c.l.b16 %v182
    %v222 = vunpack.c.l.b16 %v183
    %v223 = vunpack.c.l.b16 %v184
    %v224 = vunpack.c.l.b16 %v185
    %v225 = vunpack.c.l.b16 %v186
    %v226 = vunpack.c.l.b16 %v187
    %v227 = vunpack.c.l.b16 %v188
    %v228 = vunpack.c.l.b16 %v189
    %v229 = vunpack.c.l.b16 %v190
    %v230 = vunpack.c.l.b16 %v191
    %v231 = vpack.c.b16 %v216, %v215
    %v232 = vpack.c.b16 %v218, %v217
    %v233 = vpack.c.b16 %v220, %v219
    %v234 = vpack.c.b16 %v222, %v221
    %v235 = vpack.c.b16 %v224, %v223
    %v236 = vpack.c.b16 %v226, %v225
    %v237 = vpack.c.b16 %v228, %v227
    %v238 = vpack.c.b16 %v230, %v229
    %247 = vmatprep.subr.bf16.mxu0 0
    %248 = vmatpush1.bf16.msra.mxu0 %v231
    %249 = vmatprep.subr.bf16.mxu0 0
    %250 = vmatpush1.bf16.msra.mxu0 %v232
    %251 = vmatprep.subr.bf16.mxu0 0
    %252 = vmatpush1.bf16.msra.mxu0 %v233
    %253 = vmatprep.subr.bf16.mxu0 0
    %254 = vmatpush1.bf16.msra.mxu0 %v234
    %255 = vmatprep.subr.bf16.mxu0 0
    %256 = vmatpush1.bf16.msra.mxu0 %v235
    %257 = vmatprep.subr.bf16.mxu0 0
    %258 = vmatpush1.bf16.msra.mxu0 %v236
    %259 = vmatprep.subr.bf16.mxu0 0
    %260 = vmatpush1.bf16.msra.mxu0 %v237
    %261 = vmatprep.subr.bf16.mxu0 0
    %262 = vmatpush1.bf16.msra.mxu0 %v238
    %263 = vmatprep.subr.bf16.mxu0 0
    %264 = vmatpush1.bf16.msra.mxu0 0
    %265 = vmatprep.subr.bf16.mxu0 0
    %266 = vmatpush1.bf16.msra.mxu0 0
    %267 = vmatprep.subr.bf16.mxu0 0
    %268 = vmatpush1.bf16.msra.mxu0 0
    %269 = vmatprep.subr.bf16.mxu0 0
    %270 = vmatpush1.bf16.msra.mxu0 0
    %271 = vmatprep.subr.bf16.mxu0 0
    %272 = vmatpush1.bf16.msra.mxu0 0
    %273 = vmatprep.subr.bf16.mxu0 0
    %274 = vmatpush1.bf16.msra.mxu0 0
    %275 = vmatprep.subr.bf16.mxu0 0
    %276 = vmatpush1.bf16.msra.mxu0 0
    %277 = vmatprep.subr.bf16.mxu0 0
    %278 = vmatpush1.bf16.msra.mxu0 0
    %279 = vmatprep.mubr.bf16.mxu0 0
    %280 = vmatmul.mubr.bf16.gmra.mrb[0].mxu0 %v175
    %v281 = vpop.f32.mrb[0].mxu0
    %v282 = vadd.f32 %v197, %v281
    %v283 = vpop.f32.mrb[0].mxu0
    %v284 = vpop.f32.mrb[0].mxu0
    %v285 = vadd.f32 %v197, %v284
    %v286 = vpop.f32.mrb[0].mxu0
    %287 = vdwg.mxu0
    %v288 = vpack.c.bf16 %v285, %v282
    %v289 = vtanh.bf16.pop %v288
    %v290 = vld [vmem:[#allocation5] sm:$0xf]
    %v291 = vld [vmem:[#allocation5 + $0x4] sm:$0xf]
    %v292 = vld [vmem:[#allocation5 + $0x8] sm:$0xf]
    %v293 = vld [vmem:[#allocation5 + $0xc] sm:$0xf]
    %v294 = vld [vmem:[#allocation5 + $0x10] sm:$0xf]
    %v295 = vld [vmem:[#allocation5 + $0x14] sm:$0xf]
    %v296 = vld [vmem:[#allocation5 + $0x18] sm:$0xf]
    %v297 = vld [vmem:[#allocation5 + $0x1c] sm:$0xf]
    %v298 = vld [vmem:[#allocation5 + $0x20] sm:$0xf]
    %v299 = vld [vmem:[#allocation5 + $0x24] sm:$0xf]
    %v300 = vld [vmem:[#allocation5 + $0x28] sm:$0xf]
    %v301 = vld [vmem:[#allocation5 + $0x2c] sm:$0xf]
    %v302 = vld [vmem:[#allocation5 + $0x30] sm:$0xf]
    %v303 = vld [vmem:[#allocation5 + $0x34] sm:$0xf]
    %v304 = vld [vmem:[#allocation5 + $0x38] sm:$0xf]
    %v305 = vld [vmem:[#allocation5 + $0x3c] sm:$0xf]
    %v306 = vld [vmem:[%s6] sm:$0x1]
    %v308 = vlaneseq
    %v309 = vshrl.u32 %v308, 7
    %v310 = vsub.s32 0, %v309
    %v311 = vrot.slane %v306, %v310
    %v329 = vunpack.c.l.b16 %v290
    %v330 = vunpack.c.l.b16 %v291
    %v331 = vunpack.c.l.b16 %v292
    %v332 = vunpack.c.l.b16 %v293
    %v333 = vunpack.c.l.b16 %v294
    %v334 = vunpack.c.l.b16 %v295
    %v335 = vunpack.c.l.b16 %v296
    %v336 = vunpack.c.l.b16 %v297
    %v337 = vunpack.c.l.b16 %v298
    %v338 = vunpack.c.l.b16 %v299
    %v339 = vunpack.c.l.b16 %v300
    %v340 = vunpack.c.l.b16 %v301
    %v341 = vunpack.c.l.b16 %v302
    %v342 = vunpack.c.l.b16 %v303
    %v343 = vunpack.c.l.b16 %v304
    %v344 = vunpack.c.l.b16 %v305
    %v345 = vpack.c.b16 %v330, %v329
    %v346 = vpack.c.b16 %v332, %v331
    %v347 = vpack.c.b16 %v334, %v333
    %v348 = vpack.c.b16 %v336, %v335
    %v349 = vpack.c.b16 %v338, %v337
    %v350 = vpack.c.b16 %v340, %v339
    %v351 = vpack.c.b16 %v342, %v341
    %v352 = vpack.c.b16 %v344, %v343
    %361 = vmatprep.subr.bf16.mxu0 0
    %362 = vmatpush1.bf16.msra.mxu0 %v345
    %363 = vmatprep.subr.bf16.mxu0 0
    %364 = vmatpush1.bf16.msra.mxu0 %v346
    %365 = vmatprep.subr.bf16.mxu0 0
    %366 = vmatpush1.bf16.msra.mxu0 %v347
    %367 = vmatprep.subr.bf16.mxu0 0
    %368 = vmatpush1.bf16.msra.mxu0 %v348
    %369 = vmatprep.subr.bf16.mxu0 0
    %370 = vmatpush1.bf16.msra.mxu0 %v349
    %371 = vmatprep.subr.bf16.mxu0 0
    %372 = vmatpush1.bf16.msra.mxu0 %v350
    %373 = vmatprep.subr.bf16.mxu0 0
    %374 = vmatpush1.bf16.msra.mxu0 %v351
    %375 = vmatprep.subr.bf16.mxu0 0
    %376 = vmatpush1.bf16.msra.mxu0 %v352
    %377 = vmatprep.subr.bf16.mxu0 0
    %378 = vmatpush1.bf16.msra.mxu0 0
    %379 = vmatprep.subr.bf16.mxu0 0
    %380 = vmatpush1.bf16.msra.mxu0 0
    %381 = vmatprep.subr.bf16.mxu0 0
    %382 = vmatpush1.bf16.msra.mxu0 0
    %383 = vmatprep.subr.bf16.mxu0 0
    %384 = vmatpush1.bf16.msra.mxu0 0
    %385 = vmatprep.subr.bf16.mxu0 0
    %386 = vmatpush1.bf16.msra.mxu0 0
    %387 = vmatprep.subr.bf16.mxu0 0
    %388 = vmatpush1.bf16.msra.mxu0 0
    %389 = vmatprep.subr.bf16.mxu0 0
    %390 = vmatpush1.bf16.msra.mxu0 0
    %391 = vmatprep.subr.bf16.mxu0 0
    %392 = vmatpush1.bf16.msra.mxu0 0
    %393 = vmatprep.mubr.bf16.mxu0 0
    %394 = vmatmul.mubr.bf16.gmra.mrb[0].mxu0 %v289
    %v395 = vpop.f32.mrb[0].mxu0
    %v396 = vadd.f32 %v311, %v395
    %v397 = vpop.f32.mrb[0].mxu0
    %v398 = vpop.f32.mrb[0].mxu0
    %v399 = vadd.f32 %v311, %v398
    %v400 = vpop.f32.mrb[0].mxu0
    %401 = vdwg.mxu0
    %v402 = vpack.c.bf16 %v399, %v396
    %v403 = vtanh.bf16.pop %v402
    %v404 = vld [vmem:[#allocation7] sm:$0xf]
    %v405 = vld [vmem:[#allocation7 + $0x4] sm:$0xf]
    %v406 = vld [vmem:[#allocation7 + $0x8] sm:$0xf]
    %v407 = vld [vmem:[#allocation7 + $0xc] sm:$0xf]
    %v408 = vld [vmem:[#allocation7 + $0x10] sm:$0xf]
    %v409 = vld [vmem:[#allocation7 + $0x14] sm:$0xf]
    %v410 = vld [vmem:[#allocation7 + $0x18] sm:$0xf]
    %v411 = vld [vmem:[#allocation7 + $0x1c] sm:$0xf]
    %v412 = vld [vmem:[#allocation7 + $0x20] sm:$0xf]
    %v413 = vld [vmem:[#allocation7 + $0x24] sm:$0xf]
    %v414 = vld [vmem:[#allocation7 + $0x28] sm:$0xf]
    %v415 = vld [vmem:[#allocation7 + $0x2c] sm:$0xf]
    %v416 = vld [vmem:[#allocation7 + $0x30] sm:$0xf]
    %v417 = vld [vmem:[#allocation7 + $0x34] sm:$0xf]
    %v418 = vld [vmem:[#allocation7 + $0x38] sm:$0xf]
    %v419 = vld [vmem:[#allocation7 + $0x3c] sm:$0xf]
    %v420 = vld [vmem:[%s8] sm:$0x1]
    %v422 = vlaneseq
    %v423 = vshrl.u32 %v422, 7
    %v424 = vsub.s32 0, %v423
    %v425 = vrot.slane %v420, %v424
    %v443 = vunpack.c.l.b16 %v404
    %v444 = vunpack.c.l.b16 %v405
    %v445 = vunpack.c.l.b16 %v406
    %v446 = vunpack.c.l.b16 %v407
    %v447 = vunpack.c.l.b16 %v408
    %v448 = vunpack.c.l.b16 %v409
    %v449 = vunpack.c.l.b16 %v410
    %v450 = vunpack.c.l.b16 %v411
    %v451 = vunpack.c.l.b16 %v412
    %v452 = vunpack.c.l.b16 %v413
    %v453 = vunpack.c.l.b16 %v414
    %v454 = vunpack.c.l.b16 %v415
    %v455 = vunpack.c.l.b16 %v416
    %v456 = vunpack.c.l.b16 %v417
    %v457 = vunpack.c.l.b16 %v418
    %v458 = vunpack.c.l.b16 %v419
    %v459 = vpack.c.b16 %v444, %v443
    %v460 = vpack.c.b16 %v446, %v445
    %v461 = vpack.c.b16 %v448, %v447
    %v462 = vpack.c.b16 %v450, %v449
    %v463 = vpack.c.b16 %v452, %v451
    %v464 = vpack.c.b16 %v454, %v453
    %v465 = vpack.c.b16 %v456, %v455
    %v466 = vpack.c.b16 %v458, %v457
    %475 = vmatprep.subr.bf16.mxu0 0
    %476 = vmatpush1.bf16.msra.mxu0 %v459
    %477 = vmatprep.subr.bf16.mxu0 0
    %478 = vmatpush1.bf16.msra.mxu0 %v460
    %479 = vmatprep.subr.bf16.mxu0 0
    %480 = vmatpush1.bf16.msra.mxu0 %v461
    %481 = vmatprep.subr.bf16.mxu0 0
    %482 = vmatpush1.bf16.msra.mxu0 %v462
    %483 = vmatprep.subr.bf16.mxu0 0
    %484 = vmatpush1.bf16.msra.mxu0 %v463
    %485 = vmatprep.subr.bf16.mxu0 0
    %486 = vmatpush1.bf16.msra.mxu0 %v464
    %487 = vmatprep.subr.bf16.mxu0 0
    %488 = vmatpush1.bf16.msra.mxu0 %v465
    %489 = vmatprep.subr.bf16.mxu0 0
    %490 = vmatpush1.bf16.msra.mxu0 %v466
    %491 = vmatprep.subr.bf16.mxu0 0
    %492 = vmatpush1.bf16.msra.mxu0 0
    %493 = vmatprep.subr.bf16.mxu0 0
    %494 = vmatpush1.bf16.msra.mxu0 0
    %495 = vmatprep.subr.bf16.mxu0 0
    %496 = vmatpush1.bf16.msra.mxu0 0
    %497 = vmatprep.subr.bf16.mxu0 0
    %498 = vmatpush1.bf16.msra.mxu0 0
    %499 = vmatprep.subr.bf16.mxu0 0
    %500 = vmatpush1.bf16.msra.mxu0 0
    %501 = vmatprep.subr.bf16.mxu0 0
    %502 = vmatpush1.bf16.msra.mxu0 0
    %503 = vmatprep.subr.bf16.mxu0 0
    %504 = vmatpush1.bf16.msra.mxu0 0
    %505 = vmatprep.subr.bf16.mxu0 0
    %506 = vmatpush1.bf16.msra.mxu0 0
    %507 = vmatprep.mubr.bf16.mxu0 0
    %508 = vmatmul.mubr.bf16.gmra.mrb[0].mxu0 %v403
    %v509 = vpop.f32.mrb[0].mxu0
    %v510 = vadd.f32 %v425, %v509
    %v511 = vpop.f32.mrb[0].mxu0
    %v512 = vpop.f32.mrb[0].mxu0
    %v513 = vadd.f32 %v425, %v512
    %v514 = vpop.f32.mrb[0].mxu0
    %515 = vdwg.mxu0
    %v516 = vpack.c.bf16 %v513, %v510
    %v517 = vtanh.bf16.pop %v516
    %v518 = vld [vmem:[#allocation8] sm:$0xf]
    %v519 = vld [vmem:[#allocation8 + $0x4] sm:$0xf]
    %v520 = vld [vmem:[#allocation8 + $0x8] sm:$0xf]
    %v521 = vld [vmem:[#allocation8 + $0xc] sm:$0xf]
    %v522 = vld [vmem:[#allocation8 + $0x10] sm:$0xf]
    %v523 = vld [vmem:[#allocation8 + $0x14] sm:$0xf]
    %v524 = vld [vmem:[#allocation8 + $0x18] sm:$0xf]
    %v525 = vld [vmem:[#allocation8 + $0x1c] sm:$0xf]
    %v526 = vld [vmem:[#allocation8 + $0x20] sm:$0xf]
    %v527 = vld [vmem:[#allocation8 + $0x24] sm:$0xf]
    %v528 = vld [vmem:[#allocation8 + $0x28] sm:$0xf]
    %v529 = vld [vmem:[#allocation8 + $0x2c] sm:$0xf]
    %v530 = vld [vmem:[#allocation8 + $0x30] sm:$0xf]
    %v531 = vld [vmem:[#allocation8 + $0x34] sm:$0xf]
    %v532 = vld [vmem:[#allocation8 + $0x38] sm:$0xf]
    %v533 = vld [vmem:[#allocation8 + $0x3c] sm:$0xf]
    %v534 = vld [vmem:[%s10] sm:$0x1]
    %v536 = vlaneseq
    %v537 = vshrl.u32 %v536, 7
    %v538 = vsub.s32 0, %v537
    %v539 = vrot.slane %v534, %v538
    %v557 = vunpack.c.l.b16 %v518
    %v558 = vunpack.c.l.b16 %v519
    %v559 = vunpack.c.l.b16 %v520
    %v560 = vunpack.c.l.b16 %v521
    %v561 = vunpack.c.l.b16 %v522
    %v562 = vunpack.c.l.b16 %v523
    %v563 = vunpack.c.l.b16 %v524
    %v564 = vunpack.c.l.b16 %v525
    %v565 = vunpack.c.l.b16 %v526
    %v566 = vunpack.c.l.b16 %v527
    %v567 = vunpack.c.l.b16 %v528
    %v568 = vunpack.c.l.b16 %v529
    %v569 = vunpack.c.l.b16 %v530
    %v570 = vunpack.c.l.b16 %v531
    %v571 = vunpack.c.l.b16 %v532
    %v572 = vunpack.c.l.b16 %v533
    %v573 = vpack.c.b16 %v558, %v557
    %v574 = vpack.c.b16 %v560, %v559
    %v575 = vpack.c.b16 %v562, %v561
    %v576 = vpack.c.b16 %v564, %v563
    %v577 = vpack.c.b16 %v566, %v565
    %v578 = vpack.c.b16 %v568, %v567
    %v579 = vpack.c.b16 %v570, %v569
    %v580 = vpack.c.b16 %v572, %v571
    %589 = vmatprep.subr.bf16.mxu0 0
    %590 = vmatpush1.bf16.msra.mxu0 %v573
    %591 = vmatprep.subr.bf16.mxu0 0
    %592 = vmatpush1.bf16.msra.mxu0 %v574
    %593 = vmatprep.subr.bf16.mxu0 0
    %594 = vmatpush1.bf16.msra.mxu0 %v575
    %595 = vmatprep.subr.bf16.mxu0 0
    %596 = vmatpush1.bf16.msra.mxu0 %v576
    %597 = vmatprep.subr.bf16.mxu0 0
    %598 = vmatpush1.bf16.msra.mxu0 %v577
    %599 = vmatprep.subr.bf16.mxu0 0
    %600 = vmatpush1.bf16.msra.mxu0 %v578
    %601 = vmatprep.subr.bf16.mxu0 0
    %602 = vmatpush1.bf16.msra.mxu0 %v579
    %603 = vmatprep.subr.bf16.mxu0 0
    %604 = vmatpush1.bf16.msra.mxu0 %v580
    %605 = vmatprep.subr.bf16.mxu0 0
    %606 = vmatpush1.bf16.msra.mxu0 0
    %607 = vmatprep.subr.bf16.mxu0 0
    %608 = vmatpush1.bf16.msra.mxu0 0
    %609 = vmatprep.subr.bf16.mxu0 0
    %610 = vmatpush1.bf16.msra.mxu0 0
    %611 = vmatprep.subr.bf16.mxu0 0
    %612 = vmatpush1.bf16.msra.mxu0 0
    %613 = vmatprep.subr.bf16.mxu0 0
    %614 = vmatpush1.bf16.msra.mxu0 0
    %615 = vmatprep.subr.bf16.mxu0 0
    %616 = vmatpush1.bf16.msra.mxu0 0
    %617 = vmatprep.subr.bf16.mxu0 0
    %618 = vmatpush1.bf16.msra.mxu0 0
    %619 = vmatprep.subr.bf16.mxu0 0
    %620 = vmatpush1.bf16.msra.mxu0 0
    %621 = vmatprep.mubr.bf16.mxu0 0
    %622 = vmatmul.mubr.bf16.gmra.mrb[0].mxu0 %v517
    %v623 = vpop.f32.mrb[0].mxu0
    %v624 = vadd.f32 %v539, %v623
    %v625 = vpop.f32.mrb[0].mxu0
    %v626 = vpop.f32.mrb[0].mxu0
    %v627 = vadd.f32 %v539, %v626
    %v628 = vpop.f32.mrb[0].mxu0
    %629 = vdwg.mxu0
    %v630 = vpack.c.bf16 %v627, %v624
    %v632 = vunpack.c.l.b16 %v630
    %v633 = vunpack.c.h.b16 %v630
    %v634 = vpack.c.b16 %v632, %v632
    %v635 = vpack.c.b16 %v633, %v633
    %638 = vst [vmem:[#allocation10] sm:$0xf] %v634
    %639 = vst [vmem:[#allocation10 + $0x4] sm:$0xf] %v635
    // Predicated region
    $region62: #{tpu_custom_call.1} parent=1 // pred_check
      _
    $region63: #{tpu_custom_call.1} parent=1 // pred_check_branch
      %641 = sbr.rel (0) target = $region65
    $region64: #{tpu_custom_call.1} parent=1 // pred_region
      %s643 = ssub.s32 128, 128
      %644 = vsyncadd [#allocation4], %s643
      %s645 = sshll.u32 [#allocation10], 4
      %s646 = int_to_ptr.vmem [resolvable:$true] %s645
      %651 = dma.vmem_to_hbm [thread:$0]  %s646, 128, %s11, [#allocation4], 64, 64, 4
    $region65: #{tpu_custom_call.1} parent=1 // pred_fallthru
      _
    // Predicated region
    $region66: #{tpu_custom_call.1} parent=1 // pred_check
      _
    $region67: #{tpu_custom_call.1} parent=1 // pred_check_branch
      %653 = sbr.rel (0) target = $region69
    $region68: #{tpu_custom_call.1} parent=1 // pred_region
      %654 = dma.done [#allocation4], 128
    $region69: #{tpu_custom_call.1} parent=1 // pred_fallthru
      _
    %655 = vsyncpa [#allocation3], 1
    %656 = vsyncpa [#allocation6], 1
    %657 = vsyncpa [#allocation9], 1
    %658 = vsyncpa [#allocation4], 1

</llo_original>
